<compile_context>
chip_gen: v5e
topology: v5e:2x2
jax: 0.10.0
libtpu: 0.0.40
codegen_flags: <defaults>
</compile_context>

<pallas_src>
import functools
import math

import jax
import jax.numpy as jnp
from jax.experimental import pallas as pl
from jax.experimental.pallas import tpu as pltpu


def _round_up(x, m):
    return (x + m - 1) // m * m


def _block(dim, pref, align):
    """Pick (tile, padded_dim) for one axis: prefer a divisor of `dim` (no padding)."""
    if dim <= pref:
        return dim, dim                      # full-extent block (exempt from alignment)
    t = pref
    while t >= align:
        if dim % t == 0:
            return t, dim
        t -= align
    return pref, _round_up(dim, pref)


def _vmem_limit(est_bytes):
    return int(min(64 << 20, max(32 << 20, 2 * est_bytes)))


# ----------------------------------------------------------------------------
# Pallas kernels
# ----------------------------------------------------------------------------
def _linear_kernel(x_ref, w_ref, b_ref, o_ref, acc_ref, *, relu):
    # x: (tm, tk) bf16, w: (tk, tn) bf16, b: (1, tn) f32, acc: (tm, tn) f32
    @pl.when(pl.program_id(2) == 0)
    def _():
        acc_ref[...] = jnp.zeros_like(acc_ref)

    acc_ref[...] += jnp.dot(x_ref[...], w_ref[...],
                            preferred_element_type=jnp.float32)

    @pl.when(pl.program_id(2) == pl.num_programs(2) - 1)
    def _():
        y = acc_ref[...] + b_ref[...]
        if relu:
            y = jnp.maximum(y, 0.0)
        o_ref[...] = y.astype(o_ref.dtype)


def _linear_ln_kernel(x_ref, w_ref, b_ref, r_ref, g_ref, bln_ref, o_ref, acc_ref,
                      *, eps):
    # Matmul with fused epilogue:  o = LayerNorm(x @ w + b + residual).
    # N (= d_model) is untiled, so the accumulator holds full rows at the last k step.
    @pl.when(pl.program_id(1) == 0)
    def _():
        acc_ref[...] = jnp.zeros_like(acc_ref)

    acc_ref[...] += jnp.dot(x_ref[...], w_ref[...],
                            preferred_element_type=jnp.float32)

    @pl.when(pl.program_id(1) == pl.num_programs(1) - 1)
    def _():
        x = acc_ref[...] + b_ref[...] + r_ref[...].astype(jnp.float32)
        n = x.shape[-1]
        mean = jnp.sum(x, axis=-1, keepdims=True) * (1.0 / n)
        xc = x - mean
        var = jnp.sum(xc * xc, axis=-1, keepdims=True) * (1.0 / n)
        xn = xc * jax.lax.rsqrt(var + eps)
        o_ref[...] = (xn * g_ref[...] + bln_ref[...]).astype(o_ref.dtype)


def _attn_core(q, k, v, kvalid, o_ref, acc_ref, *, num_heads, scale, causal):
    """q: (Sq, D) bf16, k/v: (Sk, D) bf16, kvalid: (1, Sk) f32."""
    Sq, D = q.shape
    Sk = k.shape[0]
    dk = D // num_heads

    # (Sq, Sk) validity mask built in-kernel: key padding [+ causal].
    valid = jnp.broadcast_to(kvalid > 0.5, (Sq, Sk))
    if causal:
        qi = jax.lax.broadcasted_iota(jnp.int32, (Sq, Sk), 0)
        ki = jax.lax.broadcasted_iota(jnp.int32, (Sq, Sk), 1)
        valid = jnp.logical_and(valid, qi >= ki)
    neg = jnp.float32(-1e9)

    for h in range(num_heads):                                  # static unroll
        sl = slice(h * dk, (h + 1) * dk)
        # (Sq, dk) x (Sk, dk) -> (Sq, Sk), contraction over dk, f32 accumulation.
        s = jax.lax.dot_general(
            q[:, sl], k[:, sl],
            dimension_numbers=(((1,), (1,)), ((), ())),
            preferred_element_type=jnp.float32) * scale
        s = jnp.where(valid, s, neg)
        m = jnp.max(s, axis=-1, keepdims=True)
        p = jnp.exp(s - m)
        denom = jnp.sum(p, axis=-1, keepdims=True)
        out_h = jnp.dot(p.astype(jnp.bfloat16), v[:, sl],
                        preferred_element_type=jnp.float32)
        # Normalize AFTER the PV matmul ((Sq,dk) scaling, not (Sq,Sk)); EUP reciprocal.
        acc_ref[:, sl] = out_h * pl.reciprocal(denom, approx=True)

    o_ref[0] = acc_ref[...].astype(o_ref.dtype)                 # lane-dense store


def _self_attn_kernel(qkv_ref, kvalid_ref, o_ref, acc_ref, *, num_heads, scale, causal):
    # qkv block: (1, S, 3D) bf16 — Q/K/V are static lane slices (no jnp.split copies).
    _, S, D3 = qkv_ref.shape
    D = D3 // 3
    q = qkv_ref[0, :, 0:D]
    k = qkv_ref[0, :, D:2 * D]
    v = qkv_ref[0, :, 2 * D:3 * D]
    _attn_core(q, k, v, kvalid_ref[0], o_ref, acc_ref,
               num_heads=num_heads, scale=scale, causal=causal)


def _cross_attn_kernel(q_ref, kv_ref, kvalid_ref, o_ref, acc_ref, *, num_heads, scale):
    # q block: (1, Sq, D); kv block: (1, Sk, 2D) — K/V are static lane slices.
    _, Sk, D2 = kv_ref.shape
    D = D2 // 2
    k = kv_ref[0, :, 0:D]
    v = kv_ref[0, :, D:2 * D]
    _attn_core(q_ref[0], k, v, kvalid_ref[0], o_ref, acc_ref,
               num_heads=num_heads, scale=scale, causal=False)


# ----------------------------------------------------------------------------
# Pallas-backed ops (wrappers)
# ----------------------------------------------------------------------------
def linear(x, w, b, relu=False, out_dtype=jnp.bfloat16, *, tm=512, tn=512, tk=512):
    """x: (..., K) @ w: (K, N) + b: (1, N)  — tiled, bf16 MXU inputs, f32 acc."""
    lead = x.shape[:-1]
    K = x.shape[-1]
    N = w.shape[-1]
    x2 = x.reshape(-1, K)
    if x2.dtype != jnp.bfloat16:
        x2 = x2.astype(jnp.bfloat16)
    M = x2.shape[0]

    tm, Mp = _block(M, tm, 8)
    tn, Np = _block(N, tn, 128)
    tk, Kp = _block(K, tk, 128)

    wq, bq = w, b
    if Mp != M:
        x2 = jnp.pad(x2, ((0, Mp - M), (0, 0)))
    if Kp != K:
        x2 = jnp.pad(x2, ((0, 0), (0, Kp - K)))
        wq = jnp.pad(wq, ((0, Kp - K), (0, 0)))
    if Np != N:
        wq = jnp.pad(wq, ((0, 0), (0, Np - N)))
        bq = jnp.pad(bq, ((0, 0), (0, Np - N)))

    grid = (Mp // tm, Np // tn, Kp // tk)
    out = pl.pallas_call(
        functools.partial(_linear_kernel, relu=relu),
        grid=grid,
        in_specs=[
            pl.BlockSpec((tm, tk), lambda i, j, k: (i, k)),
            pl.BlockSpec((tk, tn), lambda i, j, k: (k, j)),
            pl.BlockSpec((1, tn), lambda i, j, k: (0, j)),
        ],
        out_specs=pl.BlockSpec((tm, tn), lambda i, j, k: (i, j)),
        out_shape=jax.ShapeDtypeStruct((Mp, Np), out_dtype),
        scratch_shapes=[pltpu.VMEM((tm, tn), jnp.float32)],
        compiler_params=pltpu.CompilerParams(
            dimension_semantics=("parallel", "parallel", "arbitrary")),
    )(x2, wq, bq)
    if (Mp, Np) != (M, N):
        out = out[:M, :N]
    return out.reshape(*lead, N)


def linear_residual_ln(x, w, b, residual, g, bln, eps=1e-5, *, tm=256, tk=512):
    """LayerNorm(x @ w + b + residual) with the bias/residual/LN fused into the
    matmul epilogue.  N (= d_model) stays a single lane-dense tile."""
    lead = x.shape[:-1]
    K = x.shape[-1]
    N = w.shape[-1]
    x2 = x.reshape(-1, K)
    if x2.dtype != jnp.bfloat16:
        x2 = x2.astype(jnp.bfloat16)
    r2 = residual.reshape(-1, N)
    if r2.dtype != jnp.bfloat16:
        r2 = r2.astype(jnp.bfloat16)
    M = x2.shape[0]

    tm, Mp = _block(M, tm, 8)
    tk, Kp = _block(K, tk, 128)

    wq = w
    if Mp != M:
        x2 = jnp.pad(x2, ((0, Mp - M), (0, 0)))
        r2 = jnp.pad(r2, ((0, Mp - M), (0, 0)))
    if Kp != K:
        x2 = jnp.pad(x2, ((0, 0), (0, Kp - K)))
        wq = jnp.pad(wq, ((0, Kp - K), (0, 0)))

    grid = (Mp // tm, Kp // tk)
    out = pl.pallas_call(
        functools.partial(_linear_ln_kernel, eps=eps),
        grid=grid,
        in_specs=[
            pl.BlockSpec((tm, tk), lambda i, k: (i, k)),
            pl.BlockSpec((tk, N), lambda i, k: (k, 0)),
            pl.BlockSpec((1, N), lambda i, k: (0, 0)),
            pl.BlockSpec((tm, N), lambda i, k: (i, 0)),
            pl.BlockSpec((1, N), lambda i, k: (0, 0)),
            pl.BlockSpec((1, N), lambda i, k: (0, 0)),
        ],
        out_specs=pl.BlockSpec((tm, N), lambda i, k: (i, 0)),
        out_shape=jax.ShapeDtypeStruct((Mp, N), jnp.bfloat16),
        scratch_shapes=[pltpu.VMEM((tm, N), jnp.float32)],
        compiler_params=pltpu.CompilerParams(
            dimension_semantics=("parallel", "arbitrary")),
    )(x2, wq, b, r2, g, bln)
    if Mp != M:
        out = out[:M]
    return out.reshape(*lead, N)


def self_attention(qkv, key_valid, num_heads, causal):
    """qkv: (B, S, 3D) bf16 (fused projection), key_valid: (B, S) bool -> (B, S, D)."""
    B, S, D3 = qkv.shape
    D = D3 // 3
    dk = D // num_heads
    kv3 = key_valid.reshape(B, 1, S).astype(jnp.float32)
    est = 2 * S * D3 * 2 + 2 * S * D * 2 + S * D * 4 + 4 * S * S * 4
    return pl.pallas_call(
        functools.partial(_self_attn_kernel, num_heads=num_heads,
                          scale=1.0 / math.sqrt(dk), causal=causal),
        grid=(B,),
        in_specs=[
            pl.BlockSpec((1, S, D3), lambda b: (b, 0, 0)),
            pl.BlockSpec((1, 1, S), lambda b: (b, 0, 0)),
        ],
        out_specs=pl.BlockSpec((1, S, D), lambda b: (b, 0, 0)),
        out_shape=jax.ShapeDtypeStruct((B, S, D), jnp.bfloat16),
        scratch_shapes=[pltpu.VMEM((S, D), jnp.float32)],
        compiler_params=pltpu.CompilerParams(
            dimension_semantics=("parallel",),
            vmem_limit_bytes=_vmem_limit(est)),
    )(qkv, kv3)


def cross_attention(q, kv, key_valid, num_heads):
    """q: (B, Sq, D), kv: (B, Sk, 2D) bf16 (fused K/V), key_valid: (B, Sk) bool."""
    B, Sq, D = q.shape
    Sk = kv.shape[1]
    dk = D // num_heads
    kv3 = key_valid.reshape(B, 1, Sk).astype(jnp.float32)
    est = 2 * Sq * D * 2 + 2 * Sk * 2 * D * 2 + 2 * Sq * D * 2 + Sq * D * 4 + 4 * Sq * Sk * 4
    return pl.pallas_call(
        functools.partial(_cross_attn_kernel, num_heads=num_heads,
                          scale=1.0 / math.sqrt(dk)),
        grid=(B,),
        in_specs=[
            pl.BlockSpec((1, Sq, D), lambda b: (b, 0, 0)),
            pl.BlockSpec((1, Sk, 2 * D), lambda b: (b, 0, 0)),
            pl.BlockSpec((1, 1, Sk), lambda b: (b, 0, 0)),
        ],
        out_specs=pl.BlockSpec((1, Sq, D), lambda b: (b, 0, 0)),
        out_shape=jax.ShapeDtypeStruct((B, Sq, D), jnp.bfloat16),
        scratch_shapes=[pltpu.VMEM((Sq, D), jnp.float32)],
        compiler_params=pltpu.CompilerParams(
            dimension_semantics=("parallel",),
            vmem_limit_bytes=_vmem_limit(est)),
    )(q, kv, kv3)


# ----------------------------------------------------------------------------
# Model glue (embeddings, fused projections, layer stacking)
# ----------------------------------------------------------------------------
def sinusoidal_pe(max_len, d_model):
    pos = jnp.arange(max_len, dtype=jnp.float32)[:, None]
    i = jnp.arange(0, d_model, 2, dtype=jnp.float32)
    div = jnp.exp(-jnp.log(10000.0) * i / d_model)
    pe = jnp.zeros((max_len, d_model), jnp.float32)
    pe = pe.at[:, 0::2].set(jnp.sin(pos * div))
    pe = pe.at[:, 1::2].set(jnp.cos(pos * div))
    return pe


def embed(table, tokens, pe):
    # TODO(synk): embedding gather stays in XLA (data-dependent row gather).
    d_model = table.shape[1]
    S = tokens.shape[1]
    return (table[tokens] * math.sqrt(d_model) + pe[:S]).astype(jnp.bfloat16)


def encoder_forward(params, src, src_valid, num_heads, pe):
    x = embed(params["src_emb"], src, pe)
    for lp in params["encoder"]:
        qkv = linear(x, lp["attn"]["qkv"]["w"], lp["attn"]["qkv"]["b"])
        a = self_attention(qkv, src_valid, num_heads, causal=False)
        x = linear_residual_ln(a, lp["attn"]["o"]["w"], lp["attn"]["o"]["b"],
                               x, lp["ln1"]["g"], lp["ln1"]["b"])
        f = linear(x, lp["ff1"]["w"], lp["ff1"]["b"], relu=True)
        x = linear_residual_ln(f, lp["ff2"]["w"], lp["ff2"]["b"],
                               x, lp["ln2"]["g"], lp["ln2"]["b"])
    return x


def decoder_forward(params, trg, enc_out, trg_valid, src_valid, num_heads, pe):
    x = embed(params["trg_emb"], trg, pe)
    for lp in params["decoder"]:
        qkv = linear(x, lp["self_attn"]["qkv"]["w"], lp["self_attn"]["qkv"]["b"])
        a = self_attention(qkv, trg_valid, num_heads, causal=True)
        x = linear_residual_ln(a, lp["self_attn"]["o"]["w"], lp["self_attn"]["o"]["b"],
                               x, lp["ln1"]["g"], lp["ln1"]["b"])
        q = linear(x, lp["cross_attn"]["q"]["w"], lp["cross_attn"]["q"]["b"])
        kv = linear(enc_out, lp["cross_attn"]["kv"]["w"], lp["cross_attn"]["kv"]["b"])
        c = cross_attention(q, kv, src_valid, num_heads)
        x = linear_residual_ln(c, lp["cross_attn"]["o"]["w"], lp["cross_attn"]["o"]["b"],
                               x, lp["ln2"]["g"], lp["ln2"]["b"])
        f = linear(x, lp["ff1"]["w"], lp["ff1"]["b"], relu=True)
        x = linear_residual_ln(f, lp["ff2"]["w"], lp["ff2"]["b"],
                               x, lp["ln3"]["g"], lp["ln3"]["b"])
    return x


def transformer_forward(params, src, trg, *, num_heads, max_seq_len,
                        src_pad_idx, trg_pad_idx):
    d_model = params["src_emb"].shape[1]
    pe = sinusoidal_pe(max_seq_len, d_model)
    src_valid = (src != src_pad_idx)   # key-padding mask (encoder self / cross attn)
    trg_valid = (trg != trg_pad_idx)   # key-padding mask (causal added in-kernel)
    enc_out = encoder_forward(params, src, src_valid, num_heads, pe)
    dec_out = decoder_forward(params, trg, enc_out, trg_valid, src_valid,
                              num_heads, pe)
    return linear(dec_out, params["out"]["w"], params["out"]["b"],
                  out_dtype=jnp.float32)


# ----------------------------------------------------------------------------
# Deterministic parameter init (xavier-uniform per matrix, like the module)
# ----------------------------------------------------------------------------
def _xavier(key, shape):
    bound = math.sqrt(6.0 / (shape[0] + shape[1]))
    return jax.random.uniform(key, shape, jnp.float32, -bound, bound)


def init_params(key, src_vocab, trg_vocab, d_model, ff_d, num_layers):
    keys = iter(jax.random.split(key, 512))
    nk = lambda: next(keys)

    def lin(d_in, d_out):
        # matmul weights stored bf16 (MXU-native); biases f32.
        return {"w": _xavier(nk(), (d_in, d_out)).astype(jnp.bfloat16),
                "b": jnp.zeros((1, d_out), jnp.float32)}

    def fused_lin(d_in, d_out, n):
        # n separate xavier-(d_in,d_out) matrices, concatenated -> one fused matmul.
        ws = [_xavier(nk(), (d_in, d_out)) for _ in range(n)]
        return {"w": jnp.concatenate(ws, axis=1).astype(jnp.bfloat16),
                "b": jnp.zeros((1, n * d_out), jnp.float32)}

    def ln(d):
        return {"g": jnp.ones((1, d), jnp.float32),
                "b": jnp.zeros((1, d), jnp.float32)}

    def mha_self_p():
        return {"qkv": fused_lin(d_model, d_model, 3), "o": lin(d_model, d_model)}

    def mha_cross_p():
        return {"q": lin(d_model, d_model), "kv": fused_lin(d_model, d_model, 2),
                "o": lin(d_model, d_model)}

    def enc_layer():
        return {"attn": mha_self_p(), "ln1": ln(d_model),
                "ff1": lin(d_model, ff_d), "ff2": lin(ff_d, d_model),
                "ln2": ln(d_model)}

    def dec_layer():
        return {"self_attn": mha_self_p(), "ln1": ln(d_model),
                "cross_attn": mha_cross_p(), "ln2": ln(d_model),
                "ff1": lin(d_model, ff_d), "ff2": lin(ff_d, d_model),
                "ln3": ln(d_model)}

    return {
        "src_emb": _xavier(nk(), (src_vocab, d_model)),
        "trg_emb": _xavier(nk(), (trg_vocab, d_model)),
        "encoder": [enc_layer() for _ in range(num_layers)],
        "decoder": [dec_layer() for _ in range(num_layers)],
        "out": lin(d_model, trg_vocab),
    }


# ----------------------------------------------------------------------------
if __name__ == "__main__":
    # small shapes consistent with the module's forward
    B, S_SRC, S_TRG = 2, 8, 8
    SRC_VOCAB, TRG_VOCAB = 32, 32
    D_MODEL, FF_D, MAX_SEQ_LEN = 32, 64, 16
    NUM_HEADS, NUM_LAYERS = 4, 2
    SRC_PAD_IDX, TRG_PAD_IDX = 0, 0

    root = jax.random.PRNGKey(0)
    k_params, k_src, k_trg = jax.random.split(root, 3)

    params = init_params(k_params, SRC_VOCAB, TRG_VOCAB, D_MODEL, FF_D, NUM_LAYERS)
    src = jax.random.randint(k_src, (B, S_SRC), 0, SRC_VOCAB, dtype=jnp.int32)
    trg = jax.random.randint(k_trg, (B, S_TRG), 0, TRG_VOCAB, dtype=jnp.int32)

    logits = transformer_forward(
        params, src, trg,
        num_heads=NUM_HEADS, max_seq_len=MAX_SEQ_LEN,
        src_pad_idx=SRC_PAD_IDX, trg_pad_idx=TRG_PAD_IDX,
    )
    logits = jax.block_until_ready(logits)

    assert logits.shape == (B, S_TRG, TRG_VOCAB), logits.shape
    assert bool(jnp.all(jnp.isfinite(logits)))
    print("KERNEL_OK")
</pallas_src>

<mosaic_0001>
module attributes {stable_mosaic.version = 11 : i64} {
  func.func @_linear_kernel(%arg0: i32, %arg1: i32, %arg2: i32, %arg3: memref<16x32xbf16, #tpu.memory_space<vmem>>, %arg4: memref<32x96xbf16, #tpu.memory_space<vmem>>, %arg5: memref<1x96xf32, #tpu.memory_space<vmem>>, %arg6: memref<16x96xbf16, #tpu.memory_space<vmem>>, %arg7: memref<16x96xf32, #tpu.memory_space<vmem>>) attributes {dimension_semantics = [#tpu.dimension_semantics<parallel>, #tpu.dimension_semantics<parallel>, #tpu.dimension_semantics<arbitrary>], iteration_bounds = array<i64: 1, 1, 1>, scalar_prefetch = 0 : i64, scratch_operands = 1 : i64, tpu.core_type = #tpu.core_type<tc>, window_params = [{transform_indices = @transform_0, window_bounds = array<i64: 16, 32>}, {transform_indices = @transform_1, window_bounds = array<i64: 32, 96>}, {transform_indices = @transform_2, window_bounds = array<i64: 1, 96>}, {transform_indices = @transform_3, window_bounds = array<i64: 16, 96>}]} {
    %c0_i32 = arith.constant 0 : i32
    %0 = arith.cmpi eq, %arg2, %c0_i32 : i32
    %1 = arith.extui %0 : i1 to i32
    %c0_i32_0 = arith.constant 0 : i32
    %2 = arith.cmpi ne, %1, %c0_i32_0 : i32
    scf.if %2 {
      %cst_10 = arith.constant 0.000000e+00 : f32
      %12 = vector.broadcast %cst_10 : f32 to vector<16x96xf32>
      %c0_11 = arith.constant 0 : index
      %c0_12 = arith.constant 0 : index
      %13 = vector.load %arg7[%c0_11, %c0_12] : memref<16x96xf32, #tpu.memory_space<vmem>>, vector<16x96xf32>
      tpu.vector_store %arg7[%c0_11, %c0_12], %12 {strides = array<i32>} : memref<16x96xf32, #tpu.memory_space<vmem>>, vector<16x96xf32>,
    } else {
    }
    %c0 = arith.constant 0 : index
    %c0_1 = arith.constant 0 : index
    %3 = vector.load %arg7[%c0, %c0_1] : memref<16x96xf32, #tpu.memory_space<vmem>>, vector<16x96xf32>
    %c0_2 = arith.constant 0 : index
    %c0_3 = arith.constant 0 : index
    %4 = vector.load %arg3[%c0_2, %c0_3] : memref<16x32xbf16, #tpu.memory_space<vmem>>, vector<16x32xbf16>
    %c0_4 = arith.constant 0 : index
    %c0_5 = arith.constant 0 : index
    %5 = vector.load %arg4[%c0_4, %c0_5] : memref<32x96xbf16, #tpu.memory_space<vmem>>, vector<32x96xbf16>
    %cst = arith.constant dense<0.000000e+00> : vector<16x96xf32>
    %6 = tpu.matmul %4, %5, %cst {dimension_numbers = #tpu.dot_dimension_numbers<[1], [0], [0], [1], [0, 0, 1, 1], [], []>} : vector<16x32xbf16>, vector<32x96xbf16>, vector<16x96xf32> -> vector<16x96xf32>
    %7 = arith.addf %3, %6 : vector<16x96xf32>
    %c0_6 = arith.constant 0 : index
    %c0_7 = arith.constant 0 : index
    %8 = vector.load %arg7[%c0_6, %c0_7] : memref<16x96xf32, #tpu.memory_space<vmem>>, vector<16x96xf32>
    tpu.vector_store %arg7[%c0_6, %c0_7], %7 {strides = array<i32>} : memref<16x96xf32, #tpu.memory_space<vmem>>, vector<16x96xf32>,
    %c0_i32_8 = arith.constant 0 : i32
    %9 = arith.cmpi eq, %arg2, %c0_i32_8 : i32
    %10 = arith.extui %9 : i1 to i32
    %c0_i32_9 = arith.constant 0 : i32
    %11 = arith.cmpi ne, %10, %c0_i32_9 : i32
    scf.if %11 {
      %c0_10 = arith.constant 0 : index
      %c0_11 = arith.constant 0 : index
      %12 = vector.load %arg7[%c0_10, %c0_11] : memref<16x96xf32, #tpu.memory_space<vmem>>, vector<16x96xf32>
      %c0_12 = arith.constant 0 : index
      %c0_13 = arith.constant 0 : index
      %13 = vector.load %arg5[%c0_12, %c0_13] : memref<1x96xf32, #tpu.memory_space<vmem>>, vector<1x96xf32>
      %14 = vector.broadcast %13 : vector<1x96xf32> to vector<16x96xf32>
      %15 = arith.addf %12, %14 : vector<16x96xf32>
      %16 = arith.truncf %15 : vector<16x96xf32> to vector<16x96xbf16>
      %c0_14 = arith.constant 0 : index
      %c0_15 = arith.constant 0 : index
      %17 = vector.load %arg6[%c0_14, %c0_15] : memref<16x96xbf16, #tpu.memory_space<vmem>>, vector<16x96xbf16>
      tpu.vector_store %arg6[%c0_14, %c0_15], %16 {strides = array<i32>} : memref<16x96xbf16, #tpu.memory_space<vmem>>, vector<16x96xbf16>,
    } else {
    }
    return
  }
  func.func @transform_0(%arg0: i32, %arg1: i32, %arg2: i32) -> (i32, i32) {
    %c0_i32 = arith.constant 0 : i32
    return %arg0, %arg2 : i32, i32
  }
  func.func @transform_1(%arg0: i32, %arg1: i32, %arg2: i32) -> (i32, i32) {
    %c0_i32 = arith.constant 0 : i32
    return %arg2, %arg1 : i32, i32
  }
  func.func @transform_2(%arg0: i32, %arg1: i32, %arg2: i32) -> (i32, i32) {
    %c0_i32 = arith.constant 0 : i32
    %c0_i32_0 = arith.constant 0 : i32
    return %c0_i32, %arg1 : i32, i32
  }
  func.func @transform_3(%arg0: i32, %arg1: i32, %arg2: i32) -> (i32, i32) {
    %c0_i32 = arith.constant 0 : i32
    return %arg0, %arg1 : i32, i32
  }
}

</mosaic_0001>

<llo_original>
// kernel: tpu_custom_call.1
$region0: #{tpu_custom_call.1}
  #allocation0 [shape = 'u32[]', space=smem, size = 0x4, offset = 0x4, fixed_abs, tag = 'smem constant byte address 0x4 - core index']
  #allocation1 [shape = 'u32[72,128]{1,0:T(1,128)}', space=vmem, size = 0x9000, scoped, tag = 'internal scratch']
  #allocation2 [shape = 'f32[16,96]{1,0:T(8,128)}', space=vmem, size = 0x2000, scoped, tag = 'scratch operand']
  %s0 = inlined_call_operand.hbm [shape: bf16[16,32], index: 0, kind: input, shape index: {}]
  %s1 = inlined_call_operand.hbm [shape: bf16[32,96], index: 1, kind: input, shape index: {}]
  %s2 = inlined_call_operand.vmem [shape: f32[1,96], index: 2, kind: input, shape index: {}]
  %s3 = inlined_call_operand.hbm [shape: bf16[16,96], index: 3, kind: output, shape index: {}]
  %s4 = sld [smem:[#allocation0]]
  $region38: #{tpu_custom_call.1} parent=0
    _
  %s6 = ssub.s32 1, %s4
  %s7 = scalar_select 0, %s6, %s4
  $region1: #{tpu_custom_call.1} parent=0
    #allocation3 [shape = 'u8[4096]{0}', space=vmem, size = 0x1000, scoped, tag = 'input window, operand 0, single buffered']
    #allocation4 [shape = 's32[1]{0}', space=sflag, size = 0x4, scoped, tag = 'scoped memory for tpu_custom_call.1']
    #allocation5 [shape = 's32[1]{0}', space=sflag, size = 0x4, scoped, tag = 'scoped memory for tpu_custom_call.1']
    #allocation6 [shape = 'u8[8192]{0}', space=vmem, size = 0x2000, scoped, tag = 'input window, operand 1, single buffered']
    #allocation7 [shape = 's32[1]{0}', space=sflag, size = 0x4, scoped, tag = 'scoped memory for tpu_custom_call.1']
    #allocation8 [shape = 'u8[4096]{0}', space=vmem, size = 0x1000, scoped, tag = 'output window, operand 0, single buffered']
    %8 = vsyncpa [#allocation4], 0
    %9 = vsyncpa [#allocation7], 0
    %10 = vsyncpa [#allocation5], 0
    // Predicated region
    $region2: #{tpu_custom_call.1} parent=1 // pred_check
      _
    $region3: #{tpu_custom_call.1} parent=1 // pred_check_branch
      %12 = sbr.rel (0) target = $region5
    $region4: #{tpu_custom_call.1} parent=1 // pred_region
      %14 = vsyncadd [#allocation4], 0
      %s15 = sshll.u32 %s0, 4
      %s16 = int_to_ptr.hbm [resolvable:$true] %s15
      %s17 = sshll.u32 [#allocation3], 4
      %s18 = int_to_ptr.vmem [resolvable:$true] %s17
      %23 = dma.hbm_to_vmem [thread:$0]  %s16, 128, %s18, [#allocation4], 64, 64, 4
    $region5: #{tpu_custom_call.1} parent=1 // pred_fallthru
      _
    // Predicated region
    $region6: #{tpu_custom_call.1} parent=1 // pred_check
      _
    $region7: #{tpu_custom_call.1} parent=1 // pred_check_branch
      %25 = sbr.rel (0) target = $region9
    $region8: #{tpu_custom_call.1} parent=1 // pred_region
      %27 = vsyncadd [#allocation7], 0
      %s28 = sshll.u32 %s1, 4
      %s29 = int_to_ptr.hbm [resolvable:$true] %s28
      %s30 = sshll.u32 [#allocation6], 4
      %s31 = int_to_ptr.vmem [resolvable:$true] %s30
      %36 = dma.hbm_to_vmem [thread:$0]  %s29, 256, %s31, [#allocation7], 64, 64, 4
    $region9: #{tpu_custom_call.1} parent=1 // pred_fallthru
      _
    // Predicated region
    $region10: #{tpu_custom_call.1} parent=1 // pred_check
      _
    $region11: #{tpu_custom_call.1} parent=1 // pred_check_branch
      %38 = sbr.rel (0) target = $region13
    $region12: #{tpu_custom_call.1} parent=1 // pred_region
      _
    $region13: #{tpu_custom_call.1} parent=1 // pred_fallthru
      _
    // Predicated region
    $region14: #{tpu_custom_call.1} parent=1 // pred_check
      _
    $region15: #{tpu_custom_call.1} parent=1 // pred_check_branch
      %40 = sbr.rel (0) target = $region17
    $region16: #{tpu_custom_call.1} parent=1 // pred_region
      %42 = dma.done [#allocation4], 128
    $region17: #{tpu_custom_call.1} parent=1 // pred_fallthru
      _
    // Predicated region
    $region18: #{tpu_custom_call.1} parent=1 // pred_check
      _
    $region19: #{tpu_custom_call.1} parent=1 // pred_check_branch
      %44 = sbr.rel (0) target = $region21
    $region20: #{tpu_custom_call.1} parent=1 // pred_region
      %46 = dma.done [#allocation7], 256
    $region21: #{tpu_custom_call.1} parent=1 // pred_fallthru
      _
    %p48 = scmp.eq.s32.totalorder 0, 0
    // Predicated region
    $region22: #{tpu_custom_call.1} parent=1 // pred_check
      %p49 = pneg %p48
    $region23: #{tpu_custom_call.1} parent=1 // pred_check_branch
      %51 = sbr.rel (%p49) target = $region25
    $region24: #{tpu_custom_call.1} parent=1 // pred_region
      %vm52 = vcmask 785408
      %53 = vst.msk [vmem:[#allocation2] sm:$0xff] %vm52, 0.0
      %54 = vst.msk [vmem:[#allocation2 + $0x8] sm:$0xff] %vm52, 0.0
    $region25: #{tpu_custom_call.1} parent=1 // pred_fallthru
      _
    %v55 = vld [vmem:[#allocation2] sm:$0xff]
    %v56 = vld [vmem:[#allocation2 + $0x8] sm:$0xff]
    %v57 = vld [vmem:[#allocation3] sm:$0xf]
    %v58 = vld [vmem:[#allocation3 + $0x4] sm:$0xf]
    %v59 = vld [vmem:[#allocation6] sm:$0xf]
    %v60 = vld [vmem:[#allocation6 + $0x4] sm:$0xf]
    %v61 = vld [vmem:[#allocation6 + $0x8] sm:$0xf]
    %v62 = vld [vmem:[#allocation6 + $0xc] sm:$0xf]
    %v65 = vunpack.c.l.b16 %v57
    %v66 = vunpack.c.l.b16 %v58
    %v67 = vpack.c.b16 %v66, %v65
    %v72 = vunpack.c.l.b16 %v59
    %v73 = vunpack.c.l.b16 %v60
    %v74 = vunpack.c.l.b16 %v61
    %v75 = vunpack.c.l.b16 %v62
    %v76 = vpack.c.b16 %v73, %v72
    %v77 = vpack.c.b16 %v75, %v74
    %vm80 = vcmask 261120
    %v82 = vsel %vm80, %v67, 0
    %84 = vmatpush.bf16.msra.mxu0 0
    %85 = vmatpush.bf16.msra.mxu0 0
    %86 = vmatpush.bf16.msra.mxu0 0
    %87 = vmatpush.bf16.msra.mxu0 0
    %88 = vmatpush.bf16.msra.mxu0 0
    %89 = vmatpush.bf16.msra.mxu0 0
    %90 = vmatpush.bf16.msra.mxu0 %v77
    %91 = vmatpush.bf16.msra.mxu0 %v76
    %92 = vmatmul.bf16.gmra.mxu0 %v82
    %v93 = vpop.f32.mrf.mxu0
    %v94 = vadd.f32 0.0, %v93
    %v95 = vpop.f32.mrf.mxu0
    %v96 = vadd.f32 0.0, %v95
    %97 = vdwg.mxu0
    %v98 = vadd.f32 %v55, %v94
    %v99 = vadd.f32 %v56, %v96
    %vm100 = vcmask 785408
    %101 = vst.msk [vmem:[#allocation2] sm:$0xff] %vm100, %v98
    %102 = vst.msk [vmem:[#allocation2 + $0x8] sm:$0xff] %vm100, %v99
    // Predicated region
    $region26: #{tpu_custom_call.1} parent=1 // pred_check
      %p103 = pneg %p48
    $region27: #{tpu_custom_call.1} parent=1 // pred_check_branch
      %105 = sbr.rel (%p103) target = $region29
    $region28: #{tpu_custom_call.1} parent=1 // pred_region
      %v106 = vld [vmem:[#allocation2] sm:$0xff]
      %v107 = vld [vmem:[#allocation2 + $0x8] sm:$0xff]
      %v108 = vld [vmem:[%s2] sm:$0x1]
      %v110 = vperm.slane %v108, 0
      %v112 = vadd.f32 %v106, %v110
      %v113 = vadd.f32 %v107, %v110
      %v114 = vpack.c.bf16 %v112, %v112
      %v115 = vpack.c.bf16 %v113, %v113
      %vm116 = vcmask 781312
      %117 = vst.msk [vmem:[#allocation8] sm:$0xf] %vm116, %v114
      %118 = vst.msk [vmem:[#allocation8 + $0x4] sm:$0xf] %vm116, %v115
    $region29: #{tpu_custom_call.1} parent=1 // pred_fallthru
      _
    // Predicated region
    $region30: #{tpu_custom_call.1} parent=1 // pred_check
      _
    $region31: #{tpu_custom_call.1} parent=1 // pred_check_branch
      %120 = sbr.rel (0) target = $region33
    $region32: #{tpu_custom_call.1} parent=1 // pred_region
      %122 = vsyncadd [#allocation5], 0
      %s123 = sshll.u32 [#allocation8], 4
      %s124 = int_to_ptr.vmem [resolvable:$true] %s123
      %s125 = sshll.u32 %s3, 4
      %s126 = int_to_ptr.hbm [resolvable:$true] %s125
      %131 = dma.vmem_to_hbm [thread:$0]  %s124, 128, %s126, [#allocation5], 64, 64, 4
    $region33: #{tpu_custom_call.1} parent=1 // pred_fallthru
      _
    // Predicated region
    $region34: #{tpu_custom_call.1} parent=1 // pred_check
      _
    $region35: #{tpu_custom_call.1} parent=1 // pred_check_branch
      %133 = sbr.rel (0) target = $region37
    $region36: #{tpu_custom_call.1} parent=1 // pred_region
      %135 = dma.done [#allocation5], 128
    $region37: #{tpu_custom_call.1} parent=1 // pred_fallthru
      _
    %136 = vsyncpa [#allocation4], 1
    %137 = vsyncpa [#allocation7], 1
    %138 = vsyncpa [#allocation5], 1

</llo_original>
